<compile_context>
chip_gen: v6e
topology: v6e:2x2x1
jax: 0.10.0
libtpu: 0.0.40
codegen_flags: <defaults>
</compile_context>

<pallas_src>
import functools

import jax
import jax.numpy as jnp
from jax import lax
from jax.experimental import pallas as pl
from jax.experimental.pallas import tpu as pltpu


def _round_up(n, m):
    return ((n + m - 1) // m) * m


def _sublayer_connection_kernel(seed_ref, x_ref, w_ref, bias_ref, o_ref, *,
                                eps, dropout_rate, train, feat_real):
    # x_ref: (TM, Fp) f32/bf16   w_ref: (Fp, Fp) bf16   bias_ref: (1, Fp) f32
    x = x_ref[...].astype(jnp.float32)
    fp = x.shape[-1]

    # --- LayerNorm stats over the real (unpadded) features -----------------
    # Padded feature columns of x are zero, so the plain sum is already the
    # sum over real columns; only `diff` needs masking for the variance.
    mean = jnp.sum(x, axis=-1, keepdims=True) * (1.0 / feat_real)
    diff = x - mean
    if feat_real != fp:
        mask = (lax.broadcasted_iota(jnp.int32, (1, fp), 1) <
                feat_real).astype(jnp.float32)
        diff = diff * mask
    var_unbiased = jnp.sum(diff * diff, axis=-1, keepdims=True) * (
        1.0 / (feat_real - 1))
    std = jnp.sqrt(var_unbiased)
    # torch LayerNorm here adds eps to std (not var); reciprocal goes to EUP.
    inv = pl.reciprocal(std + eps)                       # (TM, 1)
    y = (diff * inv).astype(w_ref.dtype)                 # bf16 for the MXU

    # --- sublayer: Linear with folded LN affine (bf16 MXU, f32 accumulate) --
    z = jnp.dot(y, w_ref[...], preferred_element_type=jnp.float32)
    z = z + bias_ref[...]

    # --- dropout (inverted scaling), identity in eval mode ------------------
    if train and dropout_rate > 0.0:
        pltpu.prng_seed(seed_ref[0] + pl.program_id(0))
        bits = pltpu.bitcast(pltpu.prng_random_bits(z.shape), jnp.uint32)
        threshold = jnp.uint32(
            min(int(round(dropout_rate * 4294967296.0)), 4294967295))
        z = jnp.where(bits >= threshold, z * (1.0 / (1.0 - dropout_rate)), 0.0)

    # --- residual ------------------------------------------------------------
    o_ref[...] = (x + z).astype(o_ref.dtype)


def sublayer_connection(x, a_2, b_2, w, wb, *, eps=1e-5, dropout_rate=0.1,
                        train=False, seed=0, row_tile=256):
    """x: [batch, seq, size]  -> [batch, seq, size]"""
    batch, seq, size = x.shape
    rows = batch * seq

    # Lane-dense feature dim and row tile (no ragged-rows assert: we pad).
    fp = _round_up(size, 128)
    tm = min(row_tile, _round_up(rows, 8))
    rows_p = _round_up(rows, tm)

    x2 = x.reshape(rows, size)
    if rows_p != rows or fp != size:
        x2 = jnp.pad(x2, ((0, rows_p - rows), (0, fp - size)))

    # Fold LayerNorm affine into the sublayer linear:
    #   y = a*(x-mean)*inv + b ;  z = y @ W + wb
    #   => z = ((x-mean)*inv) @ (a[:,None]*W) + (b @ W + wb)
    w_f32 = w.astype(jnp.float32)
    w_fold = a_2.astype(jnp.float32)[:, None] * w_f32
    bias_fold = b_2.astype(jnp.float32) @ w_f32 + wb.astype(jnp.float32)

    w_bf16 = w_fold.astype(jnp.bfloat16)
    if fp != size:
        w_bf16 = jnp.pad(w_bf16, ((0, fp - size), (0, fp - size)))
        bias_fold = jnp.pad(bias_fold, (0, fp - size))
    bias2 = bias_fold.reshape(1, fp)

    seed_arr = jnp.array([seed], dtype=jnp.int32)

    kernel = functools.partial(
        _sublayer_connection_kernel,
        eps=eps, dropout_rate=dropout_rate, train=train, feat_real=size)

    # VMEM budget: double-buffered x/out tiles + resident bf16 W + bias.
    x_bytes = jnp.dtype(x.dtype).itemsize
    tile_bytes = tm * fp * x_bytes
    needed = 2 * tile_bytes * 2 + 2 * fp * fp * 2 + 2 * fp * 4 + (1 << 20)
    vmem_limit = int(min(max(needed * 2, 16 * 1024 * 1024),
                         100 * 1024 * 1024))

    cost = pl.CostEstimate(
        flops=2 * rows_p * fp * fp,
        transcendentals=2 * rows_p,                     # sqrt + reciprocal / row
        bytes_accessed=2 * rows_p * fp * x_bytes + fp * fp * 2 + fp * 4)

    out2 = pl.pallas_call(
        kernel,
        out_shape=jax.ShapeDtypeStruct((rows_p, fp), x.dtype),
        grid_spec=pltpu.PrefetchScalarGridSpec(
            num_scalar_prefetch=1,
            grid=(rows_p // tm,),
            in_specs=[
                pl.BlockSpec((tm, fp), lambda i, seed: (i, 0)),   # x
                pl.BlockSpec((fp, fp), lambda i, seed: (0, 0)),   # W (folded, bf16)
                pl.BlockSpec((1, fp), lambda i, seed: (0, 0)),    # bias (folded)
            ],
            out_specs=pl.BlockSpec((tm, fp), lambda i, seed: (i, 0)),
        ),
        compiler_params=pltpu.CompilerParams(
            dimension_semantics=("parallel",),
            vmem_limit_bytes=vmem_limit),
        cost_estimate=cost,
    )(seed_arr, x2, w_bf16, bias2)

    return out2[:rows, :size].reshape(batch, seq, size)


def _reference(x, a_2, b_2, w, wb, eps=1e-5):
    # eval-mode reference (dropout = identity), torch-style unbiased std.
    mean = jnp.mean(x, axis=-1, keepdims=True)
    diff = x - mean
    var_unbiased = jnp.sum(diff * diff, axis=-1, keepdims=True) / (
        x.shape[-1] - 1)
    std = jnp.sqrt(var_unbiased)
    y = a_2 * diff / (std + eps) + b_2
    z = jnp.einsum("bsf,fg->bsg", y, w) + wb
    return x + z


if __name__ == "__main__":
    batch, seq, size = 2, 8, 32
    key = jax.random.PRNGKey(0)
    kx, kw = jax.random.split(key)

    x = jax.random.normal(kx, (batch, seq, size), dtype=jnp.float32)

    # Deterministic parameter init (LayerNorm: a_2=ones, b_2=zeros; sublayer
    # Linear weights from a fixed PRNG, bias=zeros).
    a_2 = jnp.ones((size,), dtype=jnp.float32)
    b_2 = jnp.zeros((size,), dtype=jnp.float32)
    w = jax.random.normal(kw, (size, size), dtype=jnp.float32) * 0.02
    wb = jnp.zeros((size,), dtype=jnp.float32)

    out = sublayer_connection(x, a_2, b_2, w, wb, dropout_rate=0.1, train=False)
    out = jax.block_until_ready(out)

    ref = _reference(x, a_2, b_2, w, wb)
    assert out.shape == (batch, seq, size)
    # Tolerance relaxed vs. the f32 reference because the matmul runs in bf16
    # (f32 accumulation on the MXU).
    assert jnp.allclose(out, ref, atol=2e-2, rtol=2e-2), "mismatch vs reference"

    print("KERNEL_OK")
</pallas_src>

<mosaic_0001>
module attributes {stable_mosaic.version = 11 : i64} {
  func.func @_sublayer_connection_kernel(%arg0: i32, %arg1: memref<1xi32, #tpu.memory_space<smem>>, %arg2: memref<16x128xf32, #tpu.memory_space<vmem>>, %arg3: memref<128x128xbf16, #tpu.memory_space<vmem>>, %arg4: memref<1x128xf32, #tpu.memory_space<vmem>>, %arg5: memref<16x128xf32, #tpu.memory_space<vmem>>) attributes {dimension_semantics = [#tpu.dimension_semantics<parallel>], iteration_bounds = array<i64: 1>, scalar_prefetch = 1 : i64, scratch_operands = 0 : i64, tpu.core_type = #tpu.core_type<tc>, window_params = [{transform_indices = @transform_0, window_bounds = array<i64: 16, 128>}, {pipeline_mode = #tpu.pipeline_mode<synchronous>, transform_indices = @transform_1, window_bounds = array<i64: 128, 128>}, {pipeline_mode = #tpu.pipeline_mode<synchronous>, transform_indices = @transform_2, window_bounds = array<i64: 1, 128>}, {transform_indices = @transform_3, window_bounds = array<i64: 16, 128>}]} {
    %c0 = arith.constant 0 : index
    %c0_0 = arith.constant 0 : index
    %0 = vector.load %arg2[%c0, %c0_0] : memref<16x128xf32, #tpu.memory_space<vmem>>, vector<16x128xf32>
    %cst = arith.constant dense<0.000000e+00> : vector<16xf32>
    %1 = vector.multi_reduction <add>, %0, %cst [1] : vector<16x128xf32> to vector<16xf32>
    %2 = vector.shape_cast %1 : vector<16xf32> to vector<16x1xf32>
    %cst_1 = arith.constant 3.125000e-02 : f32
    %3 = vector.broadcast %cst_1 : f32 to vector<16x1xf32>
    %4 = arith.mulf %2, %3 : vector<16x1xf32>
    %5 = vector.broadcast %4 : vector<16x1xf32> to vector<16x128xf32>
    %6 = arith.subf %0, %5 : vector<16x128xf32>
    %7 = tpu.iota {dimensions = array<i32: 1>} : vector<1x128xi32>
    %c32_i32 = arith.constant 32 : i32
    %8 = vector.broadcast %c32_i32 : i32 to vector<1x128xi32>
    %9 = arith.cmpi slt, %7, %8 : vector<1x128xi32>
    %10 = arith.extui %9 : vector<1x128xi1> to vector<1x128xi32>
    %11 = arith.sitofp %10 : vector<1x128xi32> to vector<1x128xf32>
    %12 = vector.broadcast %11 : vector<1x128xf32> to vector<16x128xf32>
    %13 = arith.mulf %6, %12 : vector<16x128xf32>
    %14 = arith.mulf %13, %13 : vector<16x128xf32>
    %cst_2 = arith.constant dense<0.000000e+00> : vector<16xf32>
    %15 = vector.multi_reduction <add>, %14, %cst_2 [1] : vector<16x128xf32> to vector<16xf32>
    %16 = vector.shape_cast %15 : vector<16xf32> to vector<16x1xf32>
    %cst_3 = arith.constant 0.0322580636 : f32
    %17 = vector.broadcast %cst_3 : f32 to vector<16x1xf32>
    %18 = arith.mulf %16, %17 : vector<16x1xf32>
    %19 = math.sqrt %18 : vector<16x1xf32>
    %cst_4 = arith.constant 9.99999974E-6 : f32
    %20 = vector.broadcast %cst_4 : f32 to vector<16x1xf32>
    %21 = arith.addf %19, %20 : vector<16x1xf32>
    %22 = tpu.reciprocal %21 : vector<16x1xf32> -> vector<16x1xf32>
    %23 = vector.broadcast %22 : vector<16x1xf32> to vector<16x128xf32>
    %24 = arith.mulf %13, %23 : vector<16x128xf32>
    %25 = arith.truncf %24 : vector<16x128xf32> to vector<16x128xbf16>
    %c0_5 = arith.constant 0 : index
    %c0_6 = arith.constant 0 : index
    %26 = vector.load %arg3[%c0_5, %c0_6] : memref<128x128xbf16, #tpu.memory_space<vmem>>, vector<128x128xbf16>
    %cst_7 = arith.constant dense<0.000000e+00> : vector<16x128xf32>
    %27 = tpu.matmul %25, %26, %cst_7 {dimension_numbers = #tpu.dot_dimension_numbers<[1], [0], [0], [1], [0, 0, 1, 1], [], []>} : vector<16x128xbf16>, vector<128x128xbf16>, vector<16x128xf32> -> vector<16x128xf32>
    %c0_8 = arith.constant 0 : index
    %c0_9 = arith.constant 0 : index
    %28 = vector.load %arg4[%c0_8, %c0_9] : memref<1x128xf32, #tpu.memory_space<vmem>>, vector<1x128xf32>
    %29 = vector.broadcast %28 : vector<1x128xf32> to vector<16x128xf32>
    %30 = arith.addf %27, %29 : vector<16x128xf32>
    %31 = arith.addf %0, %30 : vector<16x128xf32>
    %c0_10 = arith.constant 0 : index
    %c0_11 = arith.constant 0 : index
    %32 = vector.load %arg5[%c0_10, %c0_11] : memref<16x128xf32, #tpu.memory_space<vmem>>, vector<16x128xf32>
    tpu.vector_store %arg5[%c0_10, %c0_11], %31 {strides = array<i32>} : memref<16x128xf32, #tpu.memory_space<vmem>>, vector<16x128xf32>,
    return
  }
  func.func @transform_0(%arg0: i32, %arg1: memref<1xi32, #tpu.memory_space<smem>>) -> (i32, i32) {
    %c0_i32 = arith.constant 0 : i32
    %c0_i32_0 = arith.constant 0 : i32
    return %arg0, %c0_i32 : i32, i32
  }
  func.func @transform_1(%arg0: i32, %arg1: memref<1xi32, #tpu.memory_space<smem>>) -> (i32, i32) {
    %c0_i32 = arith.constant 0 : i32
    %c0_i32_0 = arith.constant 0 : i32
    %c0_i32_1 = arith.constant 0 : i32
    return %c0_i32, %c0_i32_0 : i32, i32
  }
  func.func @transform_2(%arg0: i32, %arg1: memref<1xi32, #tpu.memory_space<smem>>) -> (i32, i32) {
    %c0_i32 = arith.constant 0 : i32
    %c0_i32_0 = arith.constant 0 : i32
    %c0_i32_1 = arith.constant 0 : i32
    return %c0_i32, %c0_i32_0 : i32, i32
  }
  func.func @transform_3(%arg0: i32, %arg1: memref<1xi32, #tpu.memory_space<smem>>) -> (i32, i32) {
    %c0_i32 = arith.constant 0 : i32
    %c0_i32_0 = arith.constant 0 : i32
    return %arg0, %c0_i32 : i32, i32
  }
}

</mosaic_0001>

<llo_original>
// kernel: tpu_custom_call.1
$region0: #{tpu_custom_call.1}
  #allocation0 [shape = 'u32[]', space=smem, size = 0x4, offset = 0x4, fixed_abs, tag = 'smem constant byte address 0x4 - core index']
  #allocation1 [shape = 'u32[144,128]{1,0:T(1,128)}', space=vmem, size = 0x12000, scoped, tag = 'internal scratch']
  #allocation2 [shape = 's32[1]{0}', space=sflag, size = 0x4, scoped, tag = 'scoped memory for tpu_custom_call.1']
  #allocation3 [shape = 's32[1]{0:T(128)S(6)}', space=smem, size = 0x200, scoped, tag = 'prefetched SMEM operand 0']
  %s0 = inlined_call_operand.<no memory space> [shape: s32[1], index: 0, kind: input, shape index: {}]
  %s1 = inlined_call_operand.hbm [shape: f32[16,128], index: 1, kind: input, shape index: {}]
  %s2 = inlined_call_operand.hbm [shape: bf16[128,128], index: 2, kind: input, shape index: {}]
  %s3 = inlined_call_operand.vmem [shape: f32[1,128], index: 3, kind: input, shape index: {}]
  %s4 = inlined_call_operand.hbm [shape: f32[16,128], index: 4, kind: output, shape index: {}]
  %s5 = sld [smem:[#allocation0]]
  $region30: #{tpu_custom_call.1} parent=0
    _
  %s7 = ssub.s32 1, %s5
  %s8 = scalar_select 0, %s7, %s5
  %9 = sst [smem:[#allocation3]] %s0
  $region1: #{tpu_custom_call.1} parent=0
    #allocation4 [shape = 'u8[8192]{0}', space=vmem, size = 0x2000, scoped, tag = 'input window, operand 1, single buffered']
    #allocation5 [shape = 's32[1]{0}', space=sflag, size = 0x4, scoped, tag = 'scoped memory for tpu_custom_call.1']
    #allocation6 [shape = 's32[1]{0}', space=sflag, size = 0x4, scoped, tag = 'scoped memory for tpu_custom_call.1']
    #allocation7 [shape = 'u8[32768]{0}', space=vmem, size = 0x8000, scoped, tag = 'input window, operand 2, single buffered']
    #allocation8 [shape = 's32[1]{0}', space=sflag, size = 0x4, scoped, tag = 'scoped memory for tpu_custom_call.1']
    #allocation9 [shape = 'u8[8192]{0}', space=vmem, size = 0x2000, scoped, tag = 'output window, operand 0, single buffered']
    %10 = vsyncpa [#allocation5], 0
    %11 = vsyncpa [#allocation8], 0
    %12 = vsyncpa [#allocation6], 0
    // Predicated region
    $region2: #{tpu_custom_call.1} parent=1 // pred_check
      _
    $region3: #{tpu_custom_call.1} parent=1 // pred_check_branch
      %14 = sbr.rel (0) target = $region5
    $region4: #{tpu_custom_call.1} parent=1 // pred_region
      %s16 = ssub.s32 256, 256
      %17 = vsyncadd [#allocation5], %s16
      %s18 = sshll.u32 [#allocation4], 4
      %s19 = int_to_ptr.vmem [resolvable:$true] %s18
      %24 = dma.hbm_to_vmem [thread:$0]  %s1, 256, %s19, [#allocation5], 128, 128, 8
    $region5: #{tpu_custom_call.1} parent=1 // pred_fallthru
      _
    // Predicated region
    $region6: #{tpu_custom_call.1} parent=1 // pred_check
      _
    $region7: #{tpu_custom_call.1} parent=1 // pred_check_branch
      %26 = sbr.rel (0) target = $region9
    $region8: #{tpu_custom_call.1} parent=1 // pred_region
      %s28 = ssub.s32 1024, 1024
      %29 = vsyncadd [#allocation8], %s28
      %s30 = sshll.u32 [#allocation7], 4
      %s31 = int_to_ptr.vmem [resolvable:$true] %s30
      %36 = dma.hbm_to_vmem [thread:$0]  %s2, 1024, %s31, [#allocation8], 64, 64, 4
    $region9: #{tpu_custom_call.1} parent=1 // pred_fallthru
      _
    // Predicated region
    $region10: #{tpu_custom_call.1} parent=1 // pred_check
      _
    $region11: #{tpu_custom_call.1} parent=1 // pred_check_branch
      %38 = sbr.rel (0) target = $region13
    $region12: #{tpu_custom_call.1} parent=1 // pred_region
      _
    $region13: #{tpu_custom_call.1} parent=1 // pred_fallthru
      _
    // Predicated region
    $region14: #{tpu_custom_call.1} parent=1 // pred_check
      _
    $region15: #{tpu_custom_call.1} parent=1 // pred_check_branch
      %40 = sbr.rel (0) target = $region17
    $region16: #{tpu_custom_call.1} parent=1 // pred_region
      %41 = dma.done [#allocation5], 256
    $region17: #{tpu_custom_call.1} parent=1 // pred_fallthru
      _
    // Predicated region
    $region18: #{tpu_custom_call.1} parent=1 // pred_check
      _
    $region19: #{tpu_custom_call.1} parent=1 // pred_check_branch
      %43 = sbr.rel (0) target = $region21
    $region20: #{tpu_custom_call.1} parent=1 // pred_region
      %44 = dma.done [#allocation8], 1024
    $region21: #{tpu_custom_call.1} parent=1 // pred_fallthru
      _
    %v46 = vld [vmem:[#allocation4] sm:$0xff]
    %v47 = vld [vmem:[#allocation4 + $0x8] sm:$0xff]
    %48 = vadd.xlane.f32.xlu0 %v46
    %v49 = vpop.xlane.xlu0 %48
    %50 = vadd.xlane.f32.xlu0 %v47
    %v51 = vpop.xlane.xlu0 %50
    %v52 = vmul.f32 %v49, 0.03125
    %v53 = vmul.f32 %v51, 0.03125
    %v54 = vsub.f32 %v46, %v52
    %v55 = vsub.f32 %v47, %v53
    %v56 = vlaneseq
    %v57 = vand.u32 %v56, 127
    %vm58 = vcmp.lt.s32.totalorder %v57, 32
    %v59 = vsel %vm58, 1, 0
    %v60 = vcvt.s32.f32 %v59
    %v61 = vmul.f32 %v54, %v60
    %v62 = vmul.f32 %v55, %v60
    %v63 = vmul.f32 %v61, %v61
    %v64 = vmul.f32 %v62, %v62
    %65 = vadd.xlane.f32.xlu0 %v63
    %v66 = vpop.xlane.xlu0 %65
    %67 = vadd.xlane.f32.xlu0 %v64
    %v68 = vpop.xlane.xlu0 %67
    %v69 = vmul.f32 %v66, 0.032258064
    %v70 = vmul.f32 %v68, 0.032258064
    %v71 = vrsqrt.pop %v69
    %v72 = vmul.f32 %v69, %v71
    %vm73 = vcmp.eq.f32.partialorder %v69, inf
    %v74 = vsel %vm73, %v69, %v72
    %vm75 = vcmp.eq.f32.partialorder %v69, 0.0
    %v76 = vand.u32 %v69, 2147483648
    %v77 = vsel %vm75, %v76, %v74
    %v78 = vrsqrt.pop %v70
    %v79 = vmul.f32 %v70, %v78
    %vm80 = vcmp.eq.f32.partialorder %v70, inf
    %v81 = vsel %vm80, %v70, %v79
    %vm82 = vcmp.eq.f32.partialorder %v70, 0.0
    %v83 = vand.u32 %v70, 2147483648
    %v84 = vsel %vm82, %v83, %v81
    %v85 = vadd.f32 %v77, 1e-05
    %v86 = vadd.f32 %v84, 1e-05
    %v87 = vrcp.pop %v85
    %v88 = vrcp.pop %v86
    %v89 = vmul.f32 %v61, %v87
    %v90 = vmul.f32 %v62, %v88
    %v91 = vpack.c.bf16 %v90, %v89
    %v92 = vld [vmem:[#allocation7] sm:$0xf]
    %v93 = vld [vmem:[#allocation7 + $0x4] sm:$0xf]
    %v94 = vld [vmem:[#allocation7 + $0x8] sm:$0xf]
    %v95 = vld [vmem:[#allocation7 + $0xc] sm:$0xf]
    %v96 = vld [vmem:[#allocation7 + $0x10] sm:$0xf]
    %v97 = vld [vmem:[#allocation7 + $0x14] sm:$0xf]
    %v98 = vld [vmem:[#allocation7 + $0x18] sm:$0xf]
    %v99 = vld [vmem:[#allocation7 + $0x1c] sm:$0xf]
    %v100 = vld [vmem:[#allocation7 + $0x20] sm:$0xf]
    %v101 = vld [vmem:[#allocation7 + $0x24] sm:$0xf]
    %v102 = vld [vmem:[#allocation7 + $0x28] sm:$0xf]
    %v103 = vld [vmem:[#allocation7 + $0x2c] sm:$0xf]
    %v104 = vld [vmem:[#allocation7 + $0x30] sm:$0xf]
    %v105 = vld [vmem:[#allocation7 + $0x34] sm:$0xf]
    %v106 = vld [vmem:[#allocation7 + $0x38] sm:$0xf]
    %v107 = vld [vmem:[#allocation7 + $0x3c] sm:$0xf]
    %v108 = vld [vmem:[%s3] sm:$0x1]
    %v110 = vlaneseq
    %v111 = vshrl.u32 %v110, 7
    %v112 = vsub.s32 0, %v111
    %v113 = vrot.slane %v108, %v112
    %v131 = vunpack.c.l.b16 %v92
    %v132 = vunpack.c.l.b16 %v93
    %v133 = vunpack.c.l.b16 %v94
    %v134 = vunpack.c.l.b16 %v95
    %v135 = vunpack.c.l.b16 %v96
    %v136 = vunpack.c.l.b16 %v97
    %v137 = vunpack.c.l.b16 %v98
    %v138 = vunpack.c.l.b16 %v99
    %v139 = vunpack.c.l.b16 %v100
    %v140 = vunpack.c.l.b16 %v101
    %v141 = vunpack.c.l.b16 %v102
    %v142 = vunpack.c.l.b16 %v103
    %v143 = vunpack.c.l.b16 %v104
    %v144 = vunpack.c.l.b16 %v105
    %v145 = vunpack.c.l.b16 %v106
    %v146 = vunpack.c.l.b16 %v107
    %v147 = vpack.c.b16 %v132, %v131
    %v148 = vpack.c.b16 %v134, %v133
    %v149 = vpack.c.b16 %v136, %v135
    %v150 = vpack.c.b16 %v138, %v137
    %v151 = vpack.c.b16 %v140, %v139
    %v152 = vpack.c.b16 %v142, %v141
    %v153 = vpack.c.b16 %v144, %v143
    %v154 = vpack.c.b16 %v146, %v145
    %163 = vmatprep.subr.bf16.mxu0 0
    %164 = vmatpush1.bf16.msra.mxu0 %v154
    %165 = vmatprep.subr.bf16.mxu0 0
    %166 = vmatpush1.bf16.msra.mxu0 %v153
    %167 = vmatprep.subr.bf16.mxu0 0
    %168 = vmatpush1.bf16.msra.mxu0 %v152
    %169 = vmatprep.subr.bf16.mxu0 0
    %170 = vmatpush1.bf16.msra.mxu0 %v151
    %171 = vmatprep.subr.bf16.mxu0 0
    %172 = vmatpush1.bf16.msra.mxu0 %v150
    %173 = vmatprep.subr.bf16.mxu0 0
    %174 = vmatpush1.bf16.msra.mxu0 %v149
    %175 = vmatprep.subr.bf16.mxu0 0
    %176 = vmatpush1.bf16.msra.mxu0 %v148
    %177 = vmatprep.subr.bf16.mxu0 0
    %178 = vmatpush1.bf16.msra.mxu0 %v147
    %179 = vmatprep.subr.bf16.mxu0 0
    %180 = vmatpush2.bf16.msra.mxu0 0
    %181 = vmatprep.subr.bf16.mxu0 0
    %182 = vmatpush2.bf16.msra.mxu0 0
    %183 = vmatprep.subr.bf16.mxu0 0
    %184 = vmatpush2.bf16.msra.mxu0 0
    %185 = vmatprep.subr.bf16.mxu0 0
    %186 = vmatpush2.bf16.msra.mxu0 0
    %187 = vmatprep.subr.bf16.mxu0 0
    %188 = vmatpush2.bf16.msra.mxu0 0
    %189 = vmatprep.subr.bf16.mxu0 0
    %190 = vmatpush2.bf16.msra.mxu0 0
    %191 = vmatprep.subr.bf16.mxu0 0
    %192 = vmatpush2.bf16.msra.mxu0 0
    %193 = vmatprep.subr.bf16.mxu0 0
    %194 = vmatpush2.bf16.msra.mxu0 0
    %195 = vmatprep.mubr.bf16.mxu0 0
    %196 = vmatmul.mubr.bf16.gmra.mxu0 %v91
    %v197 = vpop.f32.mrf.mxu0
    %v198 = vadd.f32 %v113, %v197
    %v199 = vpop.f32.mrf.mxu0
    %v200 = vpop.f32.mrf.mxu0
    %v201 = vadd.f32 %v113, %v200
    %v202 = vpop.f32.mrf.mxu0
    %203 = vdwg.mxu0
    %v204 = vadd.f32 %v46, %v198
    %v205 = vadd.f32 %v47, %v201
    %206 = vst [vmem:[#allocation9] sm:$0xff] %v204
    %207 = vst [vmem:[#allocation9 + $0x8] sm:$0xff] %v205
    // Predicated region
    $region22: #{tpu_custom_call.1} parent=1 // pred_check
      _
    $region23: #{tpu_custom_call.1} parent=1 // pred_check_branch
      %209 = sbr.rel (0) target = $region25
    $region24: #{tpu_custom_call.1} parent=1 // pred_region
      %s211 = ssub.s32 256, 256
      %212 = vsyncadd [#allocation6], %s211
      %s213 = sshll.u32 [#allocation9], 4
      %s214 = int_to_ptr.vmem [resolvable:$true] %s213
      %219 = dma.vmem_to_hbm [thread:$0]  %s214, 256, %s4, [#allocation6], 128, 128, 8
    $region25: #{tpu_custom_call.1} parent=1 // pred_fallthru
      _
    // Predicated region
    $region26: #{tpu_custom_call.1} parent=1 // pred_check
      _
    $region27: #{tpu_custom_call.1} parent=1 // pred_check_branch
      %221 = sbr.rel (0) target = $region29
    $region28: #{tpu_custom_call.1} parent=1 // pred_region
      %222 = dma.done [#allocation6], 256
    $region29: #{tpu_custom_call.1} parent=1 // pred_fallthru
      _
    %223 = vsyncpa [#allocation5], 1
    %224 = vsyncpa [#allocation8], 1
    %225 = vsyncpa [#allocation6], 1

</llo_original>
